<compile_context>
chip_gen: v7x
topology: tpu7x:2x2x1
jax: 0.10.0
libtpu: 0.0.40
codegen_flags: <defaults>
</compile_context>

<pallas_src>
import math

import jax
import jax.numpy as jnp
from jax.experimental import pallas as pl
from jax.experimental.pallas import tpu as pltpu

_LANE = 128
_TILE_CAP = 16 * 1024          # max batch lanes per grid step (sweep 8K..32K)

# Packed-parameter slab layout (float32, shape [10, 16]), sigmoid pre-folded:
#   cols  0:2   0.5 *W1      [10, 2]   (PyTorch layout: [out, in])
#   cols  2:12  0.25*W2      [10, 10]
#   col   12    0.25*W3^T    [10]      (PyTorch W3 is [1, 10])
#   col   13    b1_hat       [10]
#   col   14    b2_hat       [10]
#   col   15    b3_hat at row 0


def mlp_kernel(p_ref, x_ref, o_ref):
    x = x_ref[...]              # [2, TB]   features on sublanes, batch on lanes
    p = p_ref[...]              # [10, 16]  packed, sigmoid-folded parameters

    w1 = p[:, 0:2]              # 0.5  * W1   [10, 2]
    w2 = p[:, 2:12]             # 0.25 * W2   [10, 10]
    w3 = p[:, 12:13]            # 0.25 * W3^T [10, 1]
    b1 = p[:, 13:14]            # [10, 1]
    b2 = p[:, 14:15]            # [10, 1]
    b3 = p[0:1, 15:16]          # [1, 1]

    # Layer 1 (2 -> 10): K=2  => broadcasted VPU mul-adds, skip the MXU.
    t1 = jnp.tanh(b1 + w1[:, 0:1] * x[0:1, :] + w1[:, 1:2] * x[1:2, :])  # [10,TB]

    # Layer 2 (10 -> 10): one MXU pass; N = TB is lane-dense.
    # (default Mosaic f32 matmul precision already matches the HIGHEST-precision
    #  reference at 1e-5 for this 10-wide contraction)
    t2 = jnp.tanh(jnp.dot(w2, t1, preferred_element_type=jnp.float32) + b2)

    # Layer 3 (10 -> 1): N=1 => sublane reduction (VPU/XLU), skip the MXU.
    t3 = jnp.tanh(jnp.sum(w3 * t2, axis=0, keepdims=True) + b3)         # [1,TB]

    # Undo the sigmoid->tanh reparameterization only on the tiny output tile.
    o_ref[...] = (0.5 * t3 + 0.5).astype(o_ref.dtype)


def pack_params(params):
    """Pack PyTorch-layout params into one [10, 16] f32 slab with the sigmoid
    affine folded in (exact reparameterization, done once per weight set)."""
    w1, b1 = params["w1"], params["b1"]      # [10, 2], [10]
    w2, b2 = params["w2"], params["b2"]      # [10, 10], [10]
    w3, b3 = params["w3"], params["b3"]      # [1, 10], [1]

    w1h = 0.5 * w1
    b1h = 0.5 * b1
    w2h = 0.25 * w2
    b2h = 0.5 * b2 + 0.25 * jnp.sum(w2, axis=1)
    w3h = 0.25 * w3
    b3h = 0.5 * b3 + 0.25 * jnp.sum(w3)

    p = jnp.zeros((10, 16), jnp.float32)
    p = p.at[:, 0:2].set(w1h)
    p = p.at[:, 2:12].set(w2h)
    p = p.at[:, 12].set(w3h[0])
    p = p.at[:, 13].set(b1h)
    p = p.at[:, 14].set(b2h)
    p = p.at[0, 15].set(b3h[0])
    return p


def _pick_tiling(B, tile_cap):
    """Pick (tb, n_tiles, Bp): tail padding < 128 lanes per tile; tile count
    even (>=2) when there's enough work so both v7x TensorCores are fed."""
    n_tiles = max(1, pl.cdiv(B, tile_cap))
    if B > 2 * _LANE and n_tiles % 2 == 1:
        n_tiles += 1
    tb = pl.cdiv(pl.cdiv(B, n_tiles), _LANE) * _LANE
    n_tiles = pl.cdiv(B, tb)
    return tb, n_tiles, n_tiles * tb


def mlp_forward_fm(xT, packed_params, *, tile_cap=_TILE_CAP):
    """Feature-major entry point: xT [2, B] float32 -> [1, B] float32.
    Use this (with pre-packed params) to avoid the host-side transpose."""
    B = xT.shape[1]
    tb, n_tiles, Bp = _pick_tiling(B, tile_cap)

    # Single pad op for the tail (zero columns produce sigmoid(bias) garbage
    # that is sliced off below -- keep that invariant).
    x_p = xT if Bp == B else jnp.pad(xT, ((0, 0), (0, Bp - B)))

    out = pl.pallas_call(
        mlp_kernel,
        out_shape=jax.ShapeDtypeStruct((1, Bp), jnp.float32),
        grid=(n_tiles,),
        in_specs=[
            pl.BlockSpec((10, 16), lambda i: (0, 0)),    # params: resident
            pl.BlockSpec((2, tb), lambda i: (0, i)),     # x tile: batch on lanes
        ],
        out_specs=pl.BlockSpec((1, tb), lambda i: (0, i)),   # lane-dense output
        compiler_params=pltpu.CompilerParams(
            dimension_semantics=("parallel",),
            vmem_limit_bytes=32 * 1024 * 1024),
        cost_estimate=pl.CostEstimate(
            flops=280 * Bp,               # ~273 FLOPs / batch element
            transcendentals=21 * Bp,      # 21 tanh / batch element
            bytes_accessed=12 * Bp + 640),
        # TODO(synk): add pipeline_mode=pl.Buffered(3) on the x spec only if a
        # trace shows exposed DMA at large tb (default double-buffer is enough).
    )(packed_params, x_p)

    return out if Bp == B else out[:, :B]


def mlp_forward(x, params, *, tile_cap=_TILE_CAP):
    """PyTorch-convention wrapper: x [B, 2] float32 -> [B, 1] float32."""
    p = pack_params(params)
    return mlp_forward_fm(x.T, p, tile_cap=tile_cap).T


def init_params(key):
    """PyTorch nn.Linear default init: uniform(+-1/sqrt(fan_in)).
    Weights stored in PyTorch layout [out, in], biases [out]."""
    dims = [(2, 10), (10, 10), (10, 1)]
    params = {}
    keys = jax.random.split(key, 2 * len(dims))
    for i, (fan_in, fan_out) in enumerate(dims):
        bound = 1.0 / math.sqrt(fan_in)
        params[f"w{i + 1}"] = jax.random.uniform(
            keys[2 * i], (fan_out, fan_in), minval=-bound, maxval=bound,
            dtype=jnp.float32)
        params[f"b{i + 1}"] = jax.random.uniform(
            keys[2 * i + 1], (fan_out,), minval=-bound, maxval=bound,
            dtype=jnp.float32)
    return params


def mlp_reference(x, params):
    """Plain-JAX reference matching the PyTorch module (x @ W.T + b)."""
    hp = jax.lax.Precision.HIGHEST
    h1 = jax.nn.sigmoid(jnp.dot(x, params["w1"].T, precision=hp) + params["b1"])
    h2 = jax.nn.sigmoid(jnp.dot(h1, params["w2"].T, precision=hp) + params["b2"])
    return jax.nn.sigmoid(jnp.dot(h2, params["w3"].T, precision=hp) + params["b3"])


if __name__ == "__main__":
    key = jax.random.PRNGKey(0)
    k_param, k_x1, k_x2 = jax.random.split(key, 3)
    params = init_params(k_param)

    # Small XOR-style batch (single padded 128-lane tile).
    B = 8
    x = jax.random.uniform(k_x1, (B, 2), minval=0.0, maxval=1.0,
                           dtype=jnp.float32)
    out = jax.block_until_ready(mlp_forward(x, params))
    ref = mlp_reference(x, params)
    assert out.shape == (B, 1), out.shape
    assert jnp.allclose(out, ref, atol=1e-5, rtol=1e-5), (out, ref)

    # Larger, non-multiple-of-tile batch: exercises the multi-tile grid (even
    # tile count for v7x megacore), the jnp.pad tail path and the slice-back.
    B2 = 1000
    x2 = jax.random.uniform(k_x2, (B2, 2), minval=0.0, maxval=1.0,
                            dtype=jnp.float32)
    out2 = jax.block_until_ready(mlp_forward(x2, params))
    ref2 = mlp_reference(x2, params)
    assert out2.shape == (B2, 1), out2.shape
    assert jnp.allclose(out2, ref2, atol=1e-5, rtol=1e-5)

    print("KERNEL_OK")
</pallas_src>

<mosaic_0001>
module attributes {stable_mosaic.version = 11 : i64} {
  func.func @mlp_kernel(%arg0: i32, %arg1: memref<10x16xf32, #tpu.memory_space<vmem>>, %arg2: memref<2x128xf32, #tpu.memory_space<vmem>>, %arg3: memref<1x128xf32, #tpu.memory_space<vmem>>) attributes {dimension_semantics = [#tpu.dimension_semantics<parallel>], iteration_bounds = array<i64: 1>, scalar_prefetch = 0 : i64, scratch_operands = 0 : i64, tpu.core_type = #tpu.core_type<tc>, window_params = [{pipeline_mode = #tpu.pipeline_mode<synchronous>, transform_indices = @transform_0, window_bounds = array<i64: 10, 16>}, {transform_indices = @transform_1, window_bounds = array<i64: 2, 128>}, {transform_indices = @transform_2, window_bounds = array<i64: 1, 128>}]} {
    %c0 = arith.constant 0 : index
    %c0_0 = arith.constant 0 : index
    %0 = vector.load %arg2[%c0, %c0_0] : memref<2x128xf32, #tpu.memory_space<vmem>>, vector<2x128xf32>
    %c0_1 = arith.constant 0 : index
    %c0_2 = arith.constant 0 : index
    %1 = vector.load %arg1[%c0_1, %c0_2] : memref<10x16xf32, #tpu.memory_space<vmem>>, vector<10x16xf32>
    %2 = vector.extract_strided_slice %1 {offsets = [0, 0], sizes = [10, 2], strides = [1, 1]} : vector<10x16xf32> to vector<10x2xf32>
    %3 = vector.extract_strided_slice %1 {offsets = [0, 2], sizes = [10, 10], strides = [1, 1]} : vector<10x16xf32> to vector<10x10xf32>
    %4 = vector.extract_strided_slice %1 {offsets = [0, 12], sizes = [10, 1], strides = [1, 1]} : vector<10x16xf32> to vector<10x1xf32>
    %5 = vector.extract_strided_slice %1 {offsets = [0, 13], sizes = [10, 1], strides = [1, 1]} : vector<10x16xf32> to vector<10x1xf32>
    %6 = vector.extract_strided_slice %1 {offsets = [0, 14], sizes = [10, 1], strides = [1, 1]} : vector<10x16xf32> to vector<10x1xf32>
    %7 = vector.extract_strided_slice %1 {offsets = [0, 15], sizes = [1, 1], strides = [1, 1]} : vector<10x16xf32> to vector<1x1xf32>
    %8 = vector.extract_strided_slice %2 {offsets = [0, 0], sizes = [10, 1], strides = [1, 1]} : vector<10x2xf32> to vector<10x1xf32>
    %9 = vector.extract_strided_slice %0 {offsets = [0, 0], sizes = [1, 128], strides = [1, 1]} : vector<2x128xf32> to vector<1x128xf32>
    %10 = vector.broadcast %8 : vector<10x1xf32> to vector<10x128xf32>
    %11 = vector.broadcast %9 : vector<1x128xf32> to vector<10x128xf32>
    %12 = arith.mulf %10, %11 : vector<10x128xf32>
    %13 = vector.broadcast %5 : vector<10x1xf32> to vector<10x128xf32>
    %14 = arith.addf %13, %12 : vector<10x128xf32>
    %15 = vector.extract_strided_slice %2 {offsets = [0, 1], sizes = [10, 1], strides = [1, 1]} : vector<10x2xf32> to vector<10x1xf32>
    %16 = vector.extract_strided_slice %0 {offsets = [1, 0], sizes = [1, 128], strides = [1, 1]} : vector<2x128xf32> to vector<1x128xf32>
    %17 = vector.broadcast %15 : vector<10x1xf32> to vector<10x128xf32>
    %18 = vector.broadcast %16 : vector<1x128xf32> to vector<10x128xf32>
    %19 = arith.mulf %17, %18 : vector<10x128xf32>
    %20 = arith.addf %14, %19 : vector<10x128xf32>
    %21 = math.tanh %20 : vector<10x128xf32>
    %cst = arith.constant dense<0.000000e+00> : vector<10x128xf32>
    %22 = tpu.matmul %3, %21, %cst {dimension_numbers = #tpu.dot_dimension_numbers<[1], [0], [0], [1], [0, 0, 1, 1], [], []>} : vector<10x10xf32>, vector<10x128xf32>, vector<10x128xf32> -> vector<10x128xf32>
    %23 = vector.broadcast %6 : vector<10x1xf32> to vector<10x128xf32>
    %24 = arith.addf %22, %23 : vector<10x128xf32>
    %25 = math.tanh %24 : vector<10x128xf32>
    %26 = vector.broadcast %4 : vector<10x1xf32> to vector<10x128xf32>
    %27 = arith.mulf %26, %25 : vector<10x128xf32>
    %cst_3 = arith.constant dense<0.000000e+00> : vector<128xf32>
    %28 = vector.multi_reduction <add>, %27, %cst_3 [0] : vector<10x128xf32> to vector<128xf32>
    %29 = vector.shape_cast %28 : vector<128xf32> to vector<1x128xf32>
    %30 = vector.broadcast %7 : vector<1x1xf32> to vector<1x128xf32>
    %31 = arith.addf %29, %30 : vector<1x128xf32>
    %32 = math.tanh %31 : vector<1x128xf32>
    %cst_4 = arith.constant 5.000000e-01 : f32
    %33 = vector.broadcast %cst_4 : f32 to vector<1x128xf32>
    %34 = arith.mulf %33, %32 : vector<1x128xf32>
    %cst_5 = arith.constant 5.000000e-01 : f32
    %35 = vector.broadcast %cst_5 : f32 to vector<1x128xf32>
    %36 = arith.addf %34, %35 : vector<1x128xf32>
    %c0_6 = arith.constant 0 : index
    %c0_7 = arith.constant 0 : index
    %37 = vector.load %arg3[%c0_6, %c0_7] : memref<1x128xf32, #tpu.memory_space<vmem>>, vector<1x128xf32>
    tpu.vector_store %arg3[%c0_6, %c0_7], %36 {strides = array<i32>} : memref<1x128xf32, #tpu.memory_space<vmem>>, vector<1x128xf32>,
    return
  }
  func.func @transform_0(%arg0: i32) -> (i32, i32) {
    %c0_i32 = arith.constant 0 : i32
    %c0_i32_0 = arith.constant 0 : i32
    %c0_i32_1 = arith.constant 0 : i32
    return %c0_i32, %c0_i32_0 : i32, i32
  }
  func.func @transform_1(%arg0: i32) -> (i32, i32) {
    %c0_i32 = arith.constant 0 : i32
    %c0_i32_0 = arith.constant 0 : i32
    return %c0_i32, %arg0 : i32, i32
  }
  func.func @transform_2(%arg0: i32) -> (i32, i32) {
    %c0_i32 = arith.constant 0 : i32
    %c0_i32_0 = arith.constant 0 : i32
    return %c0_i32, %arg0 : i32, i32
  }
}

</mosaic_0001>

<llo_original>
// kernel: tpu_custom_call.1
$region0: #{tpu_custom_call.1}
  #allocation0 [shape = 'u32[]', space=smem, size = 0x4, offset = 0x4, fixed_abs, tag = 'smem constant byte address 0x4 - core index']
  #allocation1 [shape = 'u32[144,128]{1,0:T(1,128)}', space=vmem, size = 0x12000, scoped, tag = 'internal scratch']
  %s0 = inlined_call_operand.hbm [shape: f32[10,16], index: 0, kind: input, shape index: {}]
  %s1 = inlined_call_operand.vmem [shape: f32[2,128], index: 1, kind: input, shape index: {}]
  %s2 = inlined_call_operand.hbm [shape: f32[1,128], index: 2, kind: output, shape index: {}]
  %s3 = sld [smem:[#allocation0]]
  $region22: #{tpu_custom_call.1} parent=0
    _
  %s5 = ssub.s32 1, %s3
  %s6 = scalar_select 0, %s5, %s3
  $region1: #{tpu_custom_call.1} parent=0
    #allocation2 [shape = 'u8[8192]{0}', space=vmem, size = 0x2000, scoped, tag = 'input window, operand 0, single buffered']
    #allocation3 [shape = 's32[1]{0}', space=sflag, size = 0x4, scoped, tag = 'scoped memory for tpu_custom_call.1']
    #allocation4 [shape = 's32[1]{0}', space=sflag, size = 0x4, scoped, tag = 'scoped memory for tpu_custom_call.1']
    #allocation5 [shape = 'u8[512]{0}', space=vmem, size = 0x400, scoped, tag = 'output window, operand 0, single buffered']
    %7 = vsyncpa [#allocation3], 0
    %8 = vsyncpa [#allocation4], 0
    // Predicated region
    $region2: #{tpu_custom_call.1} parent=1 // pred_check
      _
    $region3: #{tpu_custom_call.1} parent=1 // pred_check_branch
      %10 = sbr.rel (0) target = $region5
    $region4: #{tpu_custom_call.1} parent=1 // pred_region
      %s12 = ssub.s32 256, 256
      %13 = vsyncadd [#allocation3], %s12
      %s14 = sshll.u32 [#allocation2], 4
      %s15 = int_to_ptr.vmem [resolvable:$true] %s14
      %20 = dma.hbm_to_vmem [thread:$0]  %s0, 256, %s15, [#allocation3], 128, 128, 8
    $region5: #{tpu_custom_call.1} parent=1 // pred_fallthru
      _
    // Predicated region
    $region6: #{tpu_custom_call.1} parent=1 // pred_check
      _
    $region7: #{tpu_custom_call.1} parent=1 // pred_check_branch
      %22 = sbr.rel (0) target = $region9
    $region8: #{tpu_custom_call.1} parent=1 // pred_region
      _
    $region9: #{tpu_custom_call.1} parent=1 // pred_fallthru
      _
    // Predicated region
    $region10: #{tpu_custom_call.1} parent=1 // pred_check
      _
    $region11: #{tpu_custom_call.1} parent=1 // pred_check_branch
      %24 = sbr.rel (0) target = $region13
    $region12: #{tpu_custom_call.1} parent=1 // pred_region
      %25 = dma.done [#allocation3], 256
    $region13: #{tpu_custom_call.1} parent=1 // pred_fallthru
      _
    %v26 = vld [vmem:[%s1] sm:$0x3]
    %v27 = vld [vmem:[#allocation2] sm:$0xff]
    %v28 = vld [vmem:[#allocation2 + $0x8] sm:$0x3]
    %30 = vset.pattern.permute.xlu0 0
    %31 = vperm.xlu0 %30, %v27
    %v32 = vpop.permute.xlu0 %31
    %35 = vset.pattern.permute.xlu0 0
    %36 = vperm.xlu0 %35, %v28
    %v37 = vpop.permute.xlu0 %36
    %v39 = vlaneseq
    %v40 = vshrl.u32 %v39, 7
    %v41 = vsub.s32 0, %v40
    %v42 = vrot.slane %v26, %v41
    %v43 = vmul.f32 %v32, %v42
    %v44 = vmul.f32 %v37, %v42
    %45 = vset.pattern.permute.xlu0 13
    %46 = vperm.xlu0 %45, %v27
    %v47 = vpop.permute.xlu0 %46
    %49 = vset.pattern.permute.xlu0 13
    %50 = vperm.xlu0 %49, %v28
    %v51 = vpop.permute.xlu0 %50
    %v53 = vadd.f32 %v47, %v43
    %v54 = vadd.f32 %v51, %v44
    %55 = vset.pattern.permute.xlu0 1
    %56 = vperm.xlu0 %55, %v27
    %v57 = vpop.permute.xlu0 %56
    %59 = vset.pattern.permute.xlu0 1
    %60 = vperm.xlu0 %59, %v28
    %v61 = vpop.permute.xlu0 %60
    %v63 = vlaneseq
    %v64 = vshrl.u32 %v63, 7
    %v65 = vsub.s32 1, %v64
    %v66 = vrot.slane %v26, %v65
    %v67 = vmul.f32 %v57, %v66
    %v68 = vmul.f32 %v61, %v66
    %v69 = vadd.f32 %v53, %v67
    %v70 = vadd.f32 %v54, %v68
    %v71 = vtanh.pop %v69
    %v72 = vtanh.pop %v70
    %73 = vset.pattern.permute.xlu0 14
    %74 = vperm.xlu0 %73, %v27
    %v75 = vpop.permute.xlu0 %74
    %77 = vset.pattern.permute.xlu0 14
    %78 = vperm.xlu0 %77, %v28
    %v79 = vpop.permute.xlu0 %78
    %81 = vrot.lane.b32.xlu0 %v27, 126
    %v82 = vpop.permute.xlu0 %81
    %83 = vrot.lane.b32.xlu0 %v28, 126
    %v84 = vpop.permute.xlu0 %83
    %vm85 = vcmask 80896
    %v86 = vsel %vm85, %v82, 0
    %v88 = vsel %vm85, %v84, 0
    %vm90 = vcmask 1041408
    %v92 = vsel %vm90, %v72, 0
    %94 = vmatprep.subr.mxu0 0.0
    %95 = vmatpush1.msra.mxu0 %v71
    %96 = vmatprep.subr.mxu0 0.0
    %97 = vmatpush1.msra.mxu0 %v92
    %98 = vmatprep.subr.mxu0 0.0
    %99 = vmatpush1.msra.mxu0 0.0
    %100 = vmatprep.subr.mxu0 0.0
    %101 = vmatpush1.msra.mxu0 0.0
    %102 = vmatprep.subr.mxu0 0.0
    %103 = vmatpush1.msra.mxu0 0.0
    %104 = vmatprep.subr.mxu0 0.0
    %105 = vmatpush1.msra.mxu0 0.0
    %106 = vmatprep.subr.mxu0 0.0
    %107 = vmatpush1.msra.mxu0 0.0
    %108 = vmatprep.subr.mxu0 0.0
    %109 = vmatpush1.msra.mxu0 0.0
    %110 = vmatprep.subr.mxu0 0.0
    %111 = vmatpush1.msra.mxu0 0.0
    %112 = vmatprep.subr.mxu0 0.0
    %113 = vmatpush1.msra.mxu0 0.0
    %114 = vmatprep.subr.mxu0 0.0
    %115 = vmatpush1.msra.mxu0 0.0
    %116 = vmatprep.subr.mxu0 0.0
    %117 = vmatpush1.msra.mxu0 0.0
    %118 = vmatprep.subr.mxu0 0.0
    %119 = vmatpush1.msra.mxu0 0.0
    %120 = vmatprep.subr.mxu0 0.0
    %121 = vmatpush1.msra.mxu0 0.0
    %122 = vmatprep.subr.mxu0 0.0
    %123 = vmatpush1.msra.mxu0 0.0
    %124 = vmatprep.subr.mxu0 0.0
    %125 = vmatpush1.msra.mxu0 0.0
    %126 = vmatprep.subr.mxu0 0.0
    %127 = vmatpush1.msra.mxu0 0.0
    %128 = vmatprep.subr.mxu0 0.0
    %129 = vmatpush1.msra.mxu0 0.0
    %130 = vmatprep.subr.mxu0 0.0
    %131 = vmatpush1.msra.mxu0 0.0
    %132 = vmatprep.subr.mxu0 0.0
    %133 = vmatpush1.msra.mxu0 0.0
    %134 = vmatprep.subr.mxu0 0.0
    %135 = vmatpush1.msra.mxu0 0.0
    %136 = vmatprep.subr.mxu0 0.0
    %137 = vmatpush1.msra.mxu0 0.0
    %138 = vmatprep.subr.mxu0 0.0
    %139 = vmatpush1.msra.mxu0 0.0
    %140 = vmatprep.subr.mxu0 0.0
    %141 = vmatpush1.msra.mxu0 0.0
    %142 = vmatprep.subr.mxu0 0.0
    %143 = vmatpush1.msra.mxu0 0.0
    %144 = vmatprep.subr.mxu0 0.0
    %145 = vmatpush1.msra.mxu0 0.0
    %146 = vmatprep.subr.mxu0 0.0
    %147 = vmatpush1.msra.mxu0 0.0
    %148 = vmatprep.subr.mxu0 0.0
    %149 = vmatpush1.msra.mxu0 0.0
    %150 = vmatprep.subr.mxu0 0.0
    %151 = vmatpush1.msra.mxu0 0.0
    %152 = vmatprep.subr.mxu0 0.0
    %153 = vmatpush1.msra.mxu0 0.0
    %154 = vmatprep.subr.mxu0 0.0
    %155 = vmatpush1.msra.mxu0 0.0
    %156 = vmatprep.subr.mxu0 0.0
    %157 = vmatpush1.msra.mxu0 0.0
    %158 = vmatprep.mubr.f32.mxu0 0.0
    %159 = vmatmul.mubr.f32.gmra.mrb[0].mxu0 %v86
    %v160 = vpop.f32.mrb[0].mxu0
    %v161 = vadd.f32 %v75, %v160
    %v162 = vpop.f32.mrb[0].mxu0
    %163 = vmatprep.mubr.f32.mxu0 0.0
    %164 = vmatmul.mubr.f32.gmra.mrb[0].mxu0 %v88
    %v165 = vpop.f32.mrb[0].mxu0
    %v166 = vadd.f32 %v79, %v165
    %v167 = vpop.f32.mrb[0].mxu0
    %168 = vdwg.mxu0
    %v169 = vtanh.pop %v161
    %v170 = vtanh.pop %v166
    %171 = vset.pattern.permute.xlu0 12
    %172 = vperm.xlu0 %171, %v27
    %v173 = vpop.permute.xlu0 %172
    %175 = vset.pattern.permute.xlu0 12
    %176 = vperm.xlu0 %175, %v28
    %v177 = vpop.permute.xlu0 %176
    %v179 = vmul.f32 %v173, %v169
    %v180 = vmul.f32 %v177, %v170
    %v181 = vsel %vm90, %v180, 0.0
    %v182 = vadd.f32 %v179, %v181
    %v183 = vrot.slane %v182, 4
    %v184 = vadd.f32 %v182, %v183
    %v185 = vrot.slane %v184, 2
    %v186 = vadd.f32 %v184, %v185
    %v187 = vrot.slane %v186, 1
    %v188 = vadd.f32 %v186, %v187
    %189 = vset.pattern.permute.xlu0 15
    %190 = vperm.xlu0 %189, %v27
    %v191 = vpop.permute.xlu0 %190
    %v193 = vadd.f32 %v188, %v191
    %v194 = vtanh.pop %v193
    %v195 = vmul.f32 %v194, 0.5
    %v196 = vadd.f32 %v195, 0.5
    %197 = vst [vmem:[#allocation5] sm:$0x1] %v196
    // Predicated region
    $region14: #{tpu_custom_call.1} parent=1 // pred_check
      _
    $region15: #{tpu_custom_call.1} parent=1 // pred_check_branch
      %199 = sbr.rel (0) target = $region17
    $region16: #{tpu_custom_call.1} parent=1 // pred_region
      %s201 = ssub.s32 16, 16
      %202 = vsyncadd [#allocation4], %s201
      %s204 = sshll.u32 [#allocation5], 4
      %s205 = int_to_ptr.vmem [resolvable:$true] %s204
      %207 = dma.vmem_to_hbm [thread:$0]  %s205, 16, %s2, [#allocation4]
    $region17: #{tpu_custom_call.1} parent=1 // pred_fallthru
      _
    // Predicated region
    $region18: #{tpu_custom_call.1} parent=1 // pred_check
      _
    $region19: #{tpu_custom_call.1} parent=1 // pred_check_branch
      %209 = sbr.rel (0) target = $region21
    $region20: #{tpu_custom_call.1} parent=1 // pred_region
      %210 = dma.done [#allocation4], 16
    $region21: #{tpu_custom_call.1} parent=1 // pred_fallthru
      _
    %211 = vsyncpa [#allocation3], 1
    %212 = vsyncpa [#allocation4], 1

</llo_original>
